<compile_context>
chip_gen: v6e
topology: v6e:2x2x1
jax: 0.10.0
libtpu: 0.0.40
codegen_flags: <defaults>
</compile_context>

<pallas_src>
import functools
import math

import jax
import jax.numpy as jnp
from jax.experimental import pallas as pl
from jax.experimental.pallas import tpu as pltpu

LANE = 128


# -----------------------------------------------------------------------------
# Video / audio mixing kernel (pairwise, read-once / write-once)
#   grid = (pair, row_tile, side); side==0 -> batch row p, side==1 -> row B-1-p
# -----------------------------------------------------------------------------
def _mix_pair_kernel(lam_ref, x1_ref, x2_ref, o_ref):
    s = pl.program_id(2)                 # 0 -> output row p, 1 -> output row B-1-p
    c1 = lam_ref[s]                      # lam        (s==0)  /  1-lam (s==1)
    c2 = lam_ref[1 - s]                  # 1-lam      (s==0)  /  lam   (s==1)
    o_ref[...] = (c1 * x1_ref[...] + c2 * x2_ref[...]).astype(o_ref.dtype)


def mixup_tensor(x, lam):
    """out[b] = lam * x[b] + (1 - lam) * x[B-1-b] (flip along batch)."""
    orig_shape = x.shape
    B = orig_shape[0]
    N = math.prod(orig_shape[1:])

    # Lane-dense layout: (B, rows, 128).  Zero-copy when N % 128 == 0 (the common
    # case for video/audio shapes); otherwise fall back to a pad + slice.
    # TODO(synk): handle the <128-lane tail in-kernel with a masked partial block
    # to avoid the pad/slice HBM round-trips in the non-divisible case.
    x_flat = x.reshape(B, N)
    pad = (-N) % LANE
    if pad:
        x_flat = jnp.pad(x_flat, ((0, 0), (0, pad)))
    Np = N + pad
    rows = Np // LANE
    x3 = x_flat.reshape(B, rows, LANE)

    # ~4 MiB per buffer (review: v6e/v7x roofline); 3 refs double-buffered ~24 MiB.
    itemsize = jnp.dtype(x.dtype).itemsize
    target_bytes = 4 << 20
    tile_rows = max(8, ((target_bytes // (LANE * itemsize)) // 8) * 8)
    if rows >= 16:
        # Keep at least two row tiles so both v7x TensorCores get work even when
        # B == 2 (only one pair).  No effect on large tensors (cap > 4 MiB tile).
        tile_rows = min(tile_rows, max(8, ((rows // 2) // 8) * 8))
    tile_rows = min(tile_rows, rows)
    n_row_tiles = pl.cdiv(rows, tile_rows)
    n_pairs = (B + 1) // 2  # odd B: middle row pairs with itself (result == x[mid])

    tile_bytes = tile_rows * LANE * itemsize
    vmem_limit = int(min(max(32 << 20, 6 * tile_bytes + (8 << 20)), 48 << 20))

    lam_f = jnp.asarray(lam, jnp.float32).reshape(())
    lam_arr = jnp.stack([lam_f, 1.0 - lam_f])  # [lam, 1-lam] in SMEM

    total_elems = B * rows * LANE
    cost = pl.CostEstimate(flops=3 * total_elems, transcendentals=0,
                           bytes_accessed=2 * total_elems * itemsize)

    out = pl.pallas_call(
        _mix_pair_kernel,
        out_shape=jax.ShapeDtypeStruct((B, rows, LANE), x.dtype),
        grid=(n_pairs, n_row_tiles, 2),
        in_specs=[
            pl.BlockSpec(memory_space=pltpu.MemorySpace.SMEM),          # [lam, 1-lam]
            # Same block index for both sides of a pair -> no re-DMA on side==1.
            pl.BlockSpec((1, tile_rows, LANE), lambda p, r, s: (p, r, 0)),
            pl.BlockSpec((1, tile_rows, LANE), lambda p, r, s: (B - 1 - p, r, 0)),
        ],
        out_specs=pl.BlockSpec(
            (1, tile_rows, LANE),
            lambda p, r, s: (p + s * (B - 1 - 2 * p), r, 0)),           # p or B-1-p
        compiler_params=pltpu.CompilerParams(
            dimension_semantics=("parallel", "parallel", "arbitrary"),
            vmem_limit_bytes=vmem_limit),
        cost_estimate=cost,
    )(lam_arr, x3, x3)

    out = out.reshape(B, Np)
    if pad:
        out = out[:, :N]
    return out.reshape(orig_shape)


# -----------------------------------------------------------------------------
# Label mixing kernel: single grid step, lane-padded (B, Cp) block.
# -----------------------------------------------------------------------------
def _mix_labels_kernel(lam_ref, lab1_ref, lab2_ref, o_ref, *, on_val, off_val):
    lam = lam_ref[0]
    one_minus = lam_ref[1]
    Bv, Cp = o_ref.shape
    classes = jax.lax.broadcasted_iota(jnp.int32, (Bv, Cp), 1)
    oh1 = jnp.where(classes == lab1_ref[...], on_val, off_val).astype(jnp.float32)
    oh2 = jnp.where(classes == lab2_ref[...], on_val, off_val).astype(jnp.float32)
    o_ref[...] = lam * oh1 + one_minus * oh2


def mixup_labels(labels, lam, num_classes, label_smoothing=0.0):
    B = labels.shape[0]
    Cp = ((num_classes + LANE - 1) // LANE) * LANE  # e.g. 400 -> 512 (lane-dense)
    off_val = float(label_smoothing) / float(num_classes)
    on_val = 1.0 - float(label_smoothing) + off_val

    lam_f = jnp.asarray(lam, jnp.float32).reshape(())
    lam_arr = jnp.stack([lam_f, 1.0 - lam_f])
    lab1 = labels.astype(jnp.int32).reshape(B, 1)
    lab2 = lab1[::-1]  # flipped labels (tiny, computed outside the kernel)

    kernel = functools.partial(_mix_labels_kernel, on_val=on_val, off_val=off_val)
    out = pl.pallas_call(
        kernel,
        out_shape=jax.ShapeDtypeStruct((B, Cp), jnp.float32),
        grid=(1,),
        in_specs=[
            pl.BlockSpec(memory_space=pltpu.MemorySpace.SMEM),  # [lam, 1-lam]
            pl.BlockSpec((B, 1), lambda i: (0, 0)),             # labels   (B,1)
            pl.BlockSpec((B, 1), lambda i: (0, 0)),             # flipped  (B,1)
        ],
        out_specs=pl.BlockSpec((B, Cp), lambda i: (0, 0)),
        compiler_params=pltpu.CompilerParams(dimension_semantics=("arbitrary",)),
    )(lam_arr, lab1, lab2)
    return out[:, :num_classes]


# -----------------------------------------------------------------------------
# MixUp module equivalent
# -----------------------------------------------------------------------------
class MixUp:
    def __init__(self, alpha=1.0, label_smoothing=0.0, num_classes=400,
                 one_hot=False):
        self.alpha = float(alpha)
        self.label_smoothing = float(label_smoothing)
        self.num_classes = int(num_classes)
        self.one_hot = one_hot

    def __call__(self, key, x_video, labels, x_audio=None):
        assert x_video.shape[0] > 1, "MixUp cannot be applied to a single instance."
        # Beta(alpha, alpha) sample (replaces torch.distributions.beta.Beta).
        lam = jax.random.beta(key, self.alpha, self.alpha)

        x_video_mixed = mixup_tensor(x_video, lam)

        if self.one_hot:
            # labels already (B, num_classes): mix in float32 (avoid int truncation).
            new_labels = mixup_tensor(labels.astype(jnp.float32), lam)
        else:
            new_labels = mixup_labels(labels, lam, self.num_classes,
                                      self.label_smoothing)

        if x_audio is not None:
            assert x_audio.shape[0] > 1, "MixUp cannot be applied to a single instance."
            x_audio_mixed = mixup_tensor(x_audio, lam)
            return x_video_mixed, x_audio_mixed, new_labels
        return x_video_mixed, new_labels


if __name__ == "__main__":
    key = jax.random.PRNGKey(0)
    k_vid, k_aud, k_lab, k_lam, k_odd, k_nd = jax.random.split(key, 6)

    # Small shapes consistent with (B, C, T, H, W) video input.
    B, C, T, H, W = 2, 3, 4, 16, 16
    num_classes = 400
    label_smoothing = 0.1

    x_video = jax.random.normal(k_vid, (B, C, T, H, W), dtype=jnp.float32)
    x_audio = jax.random.normal(k_aud, (B, 1, 80, 128), dtype=jnp.float32)
    labels = jax.random.randint(k_lab, (B,), 0, num_classes, dtype=jnp.int32)

    mixup = MixUp(alpha=1.0, label_smoothing=label_smoothing,
                  num_classes=num_classes, one_hot=False)
    x_mixed, a_mixed, labels_mixed = mixup(k_lam, x_video, labels, x_audio=x_audio)
    jax.block_until_ready((x_mixed, a_mixed, labels_mixed))

    # Reference check in plain JAX.
    lam = jax.random.beta(k_lam, 1.0, 1.0)
    x_ref = lam * x_video + (1.0 - lam) * jnp.flip(x_video, axis=0)
    a_ref = lam * x_audio + (1.0 - lam) * jnp.flip(x_audio, axis=0)
    off = label_smoothing / num_classes
    on = 1.0 - label_smoothing + off
    oh = jax.nn.one_hot(labels, num_classes) * (on - off) + off
    lab_ref = lam * oh + (1.0 - lam) * jnp.flip(oh, axis=0)

    assert jnp.allclose(x_mixed, x_ref, atol=1e-5), "video mix mismatch"
    assert jnp.allclose(a_mixed, a_ref, atol=1e-5), "audio mix mismatch"
    assert jnp.allclose(labels_mixed, lab_ref, atol=1e-5), "label mix mismatch"

    # Odd batch size: the middle row pairs with itself.
    x_odd = jax.random.normal(k_odd, (3, 8, 128), dtype=jnp.float32)
    lam3 = jnp.float32(0.3)
    y_odd = mixup_tensor(x_odd, lam3)
    jax.block_until_ready(y_odd)
    y_ref = lam3 * x_odd + (1.0 - lam3) * jnp.flip(x_odd, axis=0)
    assert jnp.allclose(y_odd, y_ref, atol=1e-5), "odd-batch mix mismatch"

    # Feature size not a multiple of 128 (exercises the pad fallback path).
    x_nd = jax.random.normal(k_nd, (2, 5, 7, 9), dtype=jnp.float32)
    y_nd = mixup_tensor(x_nd, lam3)
    jax.block_until_ready(y_nd)
    y_nd_ref = lam3 * x_nd + (1.0 - lam3) * jnp.flip(x_nd, axis=0)
    assert jnp.allclose(y_nd, y_nd_ref, atol=1e-5), "non-divisible mix mismatch"

    # one_hot=True path: labels are already dense one-hot vectors (float mixing).
    mixup_oh = MixUp(alpha=1.0, num_classes=16, one_hot=True)
    oh_labels = jax.nn.one_hot(jnp.array([3, 7]), 16)
    _, lab_oh_mixed = mixup_oh(k_lam, x_video, oh_labels)
    jax.block_until_ready(lab_oh_mixed)
    lab_oh_ref = lam * oh_labels + (1.0 - lam) * jnp.flip(oh_labels, axis=0)
    assert jnp.allclose(lab_oh_mixed, lab_oh_ref, atol=1e-5), "one_hot mix mismatch"

    print("KERNEL_OK")
</pallas_src>

<mosaic_0001>
module attributes {stable_mosaic.version = 11 : i64} {
  func.func @_mix_pair_kernel(%arg0: i32, %arg1: i32, %arg2: i32, %arg3: memref<2xf32, #tpu.memory_space<smem>>, %arg4: memref<1x8x128xf32, #tpu.memory_space<vmem>>, %arg5: memref<1x8x128xf32, #tpu.memory_space<vmem>>, %arg6: memref<1x8x128xf32, #tpu.memory_space<vmem>>) attributes {dimension_semantics = [#tpu.dimension_semantics<parallel>, #tpu.dimension_semantics<parallel>, #tpu.dimension_semantics<arbitrary>], iteration_bounds = array<i64: 1, 3, 2>, scalar_prefetch = 0 : i64, scratch_operands = 0 : i64, tpu.core_type = #tpu.core_type<tc>, window_params = [{transform_indices = @transform_0, window_bounds = array<i64: 2>}, {transform_indices = @transform_1, window_bounds = array<i64: 1, 8, 128>}, {transform_indices = @transform_2, window_bounds = array<i64: 1, 8, 128>}, {transform_indices = @transform_3, window_bounds = array<i64: 1, 8, 128>}]} {
    %0 = arith.index_cast %arg2 : i32 to index
    %1 = memref.load %arg3[%0] : memref<2xf32, #tpu.memory_space<smem>>
    %c1_i32 = arith.constant 1 : i32
    %2 = arith.subi %c1_i32, %arg2 : i32
    %3 = arith.index_cast %2 : i32 to index
    %4 = memref.load %arg3[%3] : memref<2xf32, #tpu.memory_space<smem>>
    %c0 = arith.constant 0 : index
    %c0_0 = arith.constant 0 : index
    %c0_1 = arith.constant 0 : index
    %5 = vector.load %arg4[%c0, %c0_0, %c0_1] : memref<1x8x128xf32, #tpu.memory_space<vmem>>, vector<1x8x128xf32>
    %6 = vector.broadcast %1 : f32 to vector<1x8x128xf32>
    %7 = arith.mulf %6, %5 : vector<1x8x128xf32>
    %c0_2 = arith.constant 0 : index
    %c0_3 = arith.constant 0 : index
    %c0_4 = arith.constant 0 : index
    %8 = vector.load %arg5[%c0_2, %c0_3, %c0_4] : memref<1x8x128xf32, #tpu.memory_space<vmem>>, vector<1x8x128xf32>
    %9 = vector.broadcast %4 : f32 to vector<1x8x128xf32>
    %10 = arith.mulf %9, %8 : vector<1x8x128xf32>
    %11 = arith.addf %7, %10 : vector<1x8x128xf32>
    %c0_5 = arith.constant 0 : index
    %c0_6 = arith.constant 0 : index
    %c0_7 = arith.constant 0 : index
    %12 = vector.load %arg6[%c0_5, %c0_6, %c0_7] : memref<1x8x128xf32, #tpu.memory_space<vmem>>, vector<1x8x128xf32>
    tpu.vector_store %arg6[%c0_5, %c0_6, %c0_7], %11 {strides = array<i32>} : memref<1x8x128xf32, #tpu.memory_space<vmem>>, vector<1x8x128xf32>,
    return
  }
  func.func @transform_0(%arg0: i32, %arg1: i32, %arg2: i32) -> i32 {
    %c0_i32 = arith.constant 0 : i32
    %c0_i32_0 = arith.constant 0 : i32
    return %c0_i32 : i32
  }
  func.func @transform_1(%arg0: i32, %arg1: i32, %arg2: i32) -> (i32, i32, i32) {
    %c0_i32 = arith.constant 0 : i32
    %c0_i32_0 = arith.constant 0 : i32
    return %arg0, %arg1, %c0_i32 : i32, i32, i32
  }
  func.func @transform_2(%arg0: i32, %arg1: i32, %arg2: i32) -> (i32, i32, i32) {
    %c1_i32 = arith.constant 1 : i32
    %0 = arith.subi %c1_i32, %arg0 : i32
    %c0_i32 = arith.constant 0 : i32
    %c0_i32_0 = arith.constant 0 : i32
    return %0, %arg1, %c0_i32 : i32, i32, i32
  }
  func.func @transform_3(%arg0: i32, %arg1: i32, %arg2: i32) -> (i32, i32, i32) {
    %c2_i32 = arith.constant 2 : i32
    %0 = arith.muli %c2_i32, %arg0 : i32
    %c1_i32 = arith.constant 1 : i32
    %1 = arith.subi %c1_i32, %0 : i32
    %2 = arith.muli %arg2, %1 : i32
    %3 = arith.addi %arg0, %2 : i32
    %c0_i32 = arith.constant 0 : i32
    %c0_i32_0 = arith.constant 0 : i32
    return %3, %arg1, %c0_i32 : i32, i32, i32
  }
}

</mosaic_0001>

<llo_original>
// kernel: tpu_custom_call.1
$region0: #{tpu_custom_call.1}
  #allocation0 [shape = 'u32[]', space=smem, size = 0x4, offset = 0x4, fixed_abs, tag = 'smem constant byte address 0x4 - core index']
  #allocation1 [shape = 'u32[144,128]{1,0:T(1,128)}', space=vmem, size = 0x12000, scoped, tag = 'internal scratch']
  %s0 = inlined_call_operand.hbm [shape: f32[2], index: 0, kind: input, shape index: {}]
  %s1 = inlined_call_operand.hbm [shape: f32[2,24,128], index: 1, kind: input, shape index: {}]
  %s2 = inlined_call_operand.hbm [shape: f32[2,24,128], index: 2, kind: input, shape index: {}]
  %s3 = inlined_call_operand.hbm [shape: f32[2,24,128], index: 3, kind: output, shape index: {}]
  %s4 = sld [smem:[#allocation0]]
  $region57: #{tpu_custom_call.1} parent=0
    _
  %s6 = ssub.s32 1, %s4
  %s7 = scalar_select 0, %s6, %s4
  $region1: #{tpu_custom_call.1} parent=0
    #allocation2 [shape = 'u8[512]{0}', space=smem, size = 0x200, scoped, tag = 'input window, operand 0, single buffered']
    #allocation3 [shape = 's32[2]{0}', space=sflag, size = 0x8, scoped, tag = 'scoped memory for tpu_custom_call.1']
    #allocation4 [shape = 's32[2]{0}', space=sflag, size = 0x8, scoped, tag = 'scoped memory for tpu_custom_call.1']
    #allocation5 [shape = 's32[2]{0}', space=sflag, size = 0x8, scoped, tag = 'scoped memory for tpu_custom_call.1']
    #allocation6 [shape = 'u8[8192]{0}', space=vmem, size = 0x2000, scoped, tag = 'input window, operand 1']
    #allocation7 [shape = 'u8[8192]{0}', space=vmem, size = 0x2000, scoped, tag = 'input window, operand 2']
    #allocation8 [shape = 's32[2]{0}', space=sflag, size = 0x8, scoped, tag = 'scoped memory for tpu_custom_call.1']
    #allocation9 [shape = 'u8[8192]{0}', space=vmem, size = 0x2000, scoped, tag = 'output window, operand 0']
    %8 = vsyncpa [#allocation5], 0
    %9 = vsyncpa [#allocation3], 0
    %s10 = scalar_lea.sflag [#allocation3], 1
    %11 = vsyncpa %s10, 0
    %12 = vsyncpa [#allocation8], 0
    %s13 = scalar_lea.sflag [#allocation8], 1
    %14 = vsyncpa %s13, 0
    %15 = vsyncpa [#allocation4], 0
    %s16 = scalar_lea.sflag [#allocation4], 1
    %17 = vsyncpa %s16, 0
    loop: start=0, step=1, limit=8
    $region2: #{tpu_custom_call.1} parent=1 // loop_pre_header
      _
    $region3: #{tpu_custom_call.1} parent=1 // loop_header
      %s19 = sphi 0, %s23
      %p20 = scmp.ge.s32.totalorder %s19, 8
      %s26 = sphi 0, %s45
      %s27 = sphi 0, %s41
      %s28 = sphi 0, %s37
      %s29 = sphi 0, %s26
      %s30 = sphi 0, %s27
      %s31 = sphi 0, %s28
      %s32 = sphi 0, %s29
      %s33 = sphi 0, %s30
      %s34 = sphi 0, %s31
      %s46 = sphi 0, %s46
      %s48 = sphi 0, %s46
      %s49 = sphi 0, %s48
      %s63 = sphi 0, %s49
      %s71 = sphi 0, %s73
      %s74 = sphi 0, %s71
      %s75 = sphi 0, %s74
      %s91 = sphi 0, %s75
      %s101 = sphi 0, %s103
      %s104 = sphi 0, %s101
      %s105 = sphi 0, %s104
      %s121 = sphi 0, %s105
      %s137 = sphi 0, %s139
      %s140 = sphi 0, %s137
      %s141 = sphi 0, %s140
      %s157 = sphi 0, %s141
    $region4: #{tpu_custom_call.1} parent=1 // loop_header_branch
      %22 = sbr.rel (%p20) target = $region8
    $region5: #{tpu_custom_call.1} parent=1 // loop_body
      %s24 = ssub.s32 %s19, 1
      %s25 = ssub.s32 %s19, 2
      %s35 = sadd.s32 1, %s28
      %p36 = scmp.ge.s32.totalorder %s35, 2
      %s37 = scalar_select %p36, 0, %s35
      %s38 = sadd.s32 1, %s27
      %s39 = scalar_select %p36, %s38, %s27
      %p40 = scmp.ge.s32.totalorder %s39, 3
      %s41 = scalar_select %p40, 0, %s39
      %s42 = sadd.s32 1, %s26
      %s43 = scalar_select %p40, %s42, %s26
      %p44 = scmp.ge.s32.totalorder %s43, 1
      %s45 = scalar_select %p44, 0, %s43
      %s47 = sadd.s32 %s46, 1
      %p50 = scmp.eq.s32.totalorder %s19, 5
      %p51 = scmp.ne.s32.totalorder %s46, %s48
      %p52 = scmp.eq.s32.totalorder %s19, 0
      %p53 = por %p51, %p52
      %p54 = scmp.ne.s32.totalorder %s46, %s48
      %p55 = scmp.eq.s32.totalorder %s24, 5
      %p56 = por %p54, %p55
      %p57 = scmp.ne.s32.totalorder %s48, %s49
      %p58 = scmp.eq.s32.totalorder %s24, 0
      %p59 = por %p57, %p58
      %p60 = scmp.ne.s32.totalorder %s48, %s49
      %p61 = scmp.eq.s32.totalorder %s25, 5
      %p62 = por %p60, %p61
      %p64 = scmp.ne.s32.totalorder %s49, %s63
      %p65 = scmp.eq.s32.totalorder %s25, 0
      %p66 = por %p64, %p65
      %s67 = ssub.s32 %s26, %s45
      %s68 = ssub.s32 %s27, %s41
      %s69 = sor.u32 %s67, %s68
      %p70 = scmp.eq.s32.totalorder %s69, 0
      %s72 = sadd.s32 %s71, 1
      %s73 = scalar_select %p70, %s71, %s72
      %p76 = pneg %p70
      %p77 = scmp.eq.s32.totalorder %s19, 5
      %p78 = por %p76, %p77
      %p79 = scmp.ne.s32.totalorder %s71, %s74
      %p80 = scmp.eq.s32.totalorder %s19, 0
      %p81 = por %p79, %p80
      %p82 = scmp.ne.s32.totalorder %s71, %s74
      %p83 = scmp.eq.s32.totalorder %s24, 5
      %p84 = por %p82, %p83
      %p85 = scmp.ne.s32.totalorder %s74, %s75
      %p86 = scmp.eq.s32.totalorder %s24, 0
      %p87 = por %p85, %p86
      %p88 = scmp.ne.s32.totalorder %s74, %s75
      %p89 = scmp.eq.s32.totalorder %s25, 5
      %p90 = por %p88, %p89
      %p92 = scmp.ne.s32.totalorder %s75, %s91
      %p93 = scmp.eq.s32.totalorder %s25, 0
      %p94 = por %p92, %p93
      %s95 = ssub.s32 1, %s26
      %s96 = ssub.s32 1, %s45
      %s97 = ssub.s32 %s95, %s96
      %s98 = ssub.s32 %s27, %s41
      %s99 = sor.u32 %s97, %s98
      %p100 = scmp.eq.s32.totalorder %s99, 0
      %s102 = sadd.s32 %s101, 1
      %s103 = scalar_select %p100, %s101, %s102
      %p106 = pneg %p100
      %p107 = scmp.eq.s32.totalorder %s19, 5
      %p108 = por %p106, %p107
      %p109 = scmp.ne.s32.totalorder %s101, %s104
      %p110 = scmp.eq.s32.totalorder %s19, 0
      %p111 = por %p109, %p110
      %p112 = scmp.ne.s32.totalorder %s101, %s104
      %p113 = scmp.eq.s32.totalorder %s24, 5
      %p114 = por %p112, %p113
      %p115 = scmp.ne.s32.totalorder %s104, %s105
      %p116 = scmp.eq.s32.totalorder %s24, 0
      %p117 = por %p115, %p116
      %p118 = scmp.ne.s32.totalorder %s104, %s105
      %p119 = scmp.eq.s32.totalorder %s25, 5
      %p120 = por %p118, %p119
      %p122 = scmp.ne.s32.totalorder %s105, %s121
      %p123 = scmp.eq.s32.totalorder %s25, 0
      %p124 = por %p122, %p123
      %s125 = smul.u32 %s26, 2
      %s126 = ssub.s32 1, %s125
      %s127 = smul.u32 %s28, %s126
      %s128 = sadd.s32 %s26, %s127
      %s129 = smul.u32 %s45, 2
      %s130 = ssub.s32 1, %s129
      %s131 = smul.u32 %s37, %s130
      %s132 = sadd.s32 %s45, %s131
      %s133 = ssub.s32 %s128, %s132
      %s134 = ssub.s32 %s27, %s41
      %s135 = sor.u32 %s133, %s134
      %p136 = scmp.eq.s32.totalorder %s135, 0
      %s138 = sadd.s32 %s137, 1
      %s139 = scalar_select %p136, %s137, %s138
      %p142 = pneg %p136
      %p143 = scmp.eq.s32.totalorder %s19, 5
      %p144 = por %p142, %p143
      %p145 = scmp.ne.s32.totalorder %s137, %s140
      %p146 = scmp.eq.s32.totalorder %s19, 0
      %p147 = por %p145, %p146
      %p148 = scmp.ne.s32.totalorder %s137, %s140
      %p149 = scmp.eq.s32.totalorder %s24, 5
      %p150 = por %p148, %p149
      %p151 = scmp.ne.s32.totalorder %s140, %s141
      %p152 = scmp.eq.s32.totalorder %s24, 0
      %p153 = por %p151, %p152
      %p154 = scmp.ne.s32.totalorder %s140, %s141
      %p155 = scmp.eq.s32.totalorder %s25, 5
      %p156 = por %p154, %p155
      %p158 = scmp.ne.s32.totalorder %s141, %s157
      %p159 = scmp.eq.s32.totalorder %s25, 0
      %p160 = por %p158, %p159
      %p161 = scmp.le.s32.totalorder 1, %s19
      %p162 = scmp.lt.s32.totalorder %s19, 7
      %p163 = pnand %p161, %p162
      %p164 = pneg %p163
      // Predicated region
      $region9: #{tpu_custom_call.1} parent=5 // pred_check
        _
      $region10: #{tpu_custom_call.1} parent=5 // pred_check_branch
        %166 = sbr.rel (%p163) target = $region12
      $region11: #{tpu_custom_call.1} parent=5 // pred_region
        %s167 = ssub.s32 %s19, 1
        // Predicated region
        $region13: #{tpu_custom_call.1} parent=11 // pred_check
          %p168 = pneg %p59
        $region14: #{tpu_custom_call.1} parent=11 // pred_check_branch
          %170 = sbr.rel (%p168) target = $region16
        $region15: #{tpu_custom_call.1} parent=11 // pred_region
          %s172 = ssub.s32 16, 16
          %173 = vsyncadd [#allocation5], %s172
          %176 = dma.hbm_to_smem %s0, 16, [#allocation2], [#allocation5]
        $region16: #{tpu_custom_call.1} parent=11 // pred_fallthru
          _
      $region12: #{tpu_custom_call.1} parent=5 // pred_fallthru
        _
      %p177 = scmp.lt.s32.totalorder %s19, 6
      // Predicated region
      $region17: #{tpu_custom_call.1} parent=5 // pred_check
        %p178 = pneg %p177
      $region18: #{tpu_custom_call.1} parent=5 // pred_check_branch
        %180 = sbr.rel (%p178) target = $region20
      $region19: #{tpu_custom_call.1} parent=5 // pred_region
        // Predicated region
        $region21: #{tpu_custom_call.1} parent=19 // pred_check
          %p181 = pneg %p81
        $region22: #{tpu_custom_call.1} parent=19 // pred_check_branch
          %183 = sbr.rel (%p181) target = $region24
        $region23: #{tpu_custom_call.1} parent=19 // pred_region
          %s184 = sand.u32 %s71, 1
          %s185 = scalar_lea.sflag [#allocation3], %s184
          %s186 = sand.u32 %s71, 1
          %s187 = smul.addr %s186, 8
          %s188 = scalar_lea.vmem [#allocation6], %s187
          %s190 = ssub.s32 128, 128
          %191 = vsyncadd %s185, %s190
          %s192 = smul.addr %s26, 3
          %s193 = sadd.s32 %s27, %s192
          %s194 = smul.addr %s193, 128
          %s195 = scalar_lea.hbm %s1, %s194
          %s197 = sshll.u32 %s188, 4
          %s198 = int_to_ptr.vmem [resolvable:$true] %s197
          %200 = dma.hbm_to_vmem [thread:$0]  %s195, 128, %s198, %s185
        $region24: #{tpu_custom_call.1} parent=19 // pred_fallthru
          _
        // Predicated region
        $region25: #{tpu_custom_call.1} parent=19 // pred_check
          %p201 = pneg %p111
        $region26: #{tpu_custom_call.1} parent=19 // pred_check_branch
          %203 = sbr.rel (%p201) target = $region28
        $region27: #{tpu_custom_call.1} parent=19 // pred_region
          %s204 = sand.u32 %s101, 1
          %s205 = scalar_lea.sflag [#allocation8], %s204
          %s206 = sand.u32 %s101, 1
          %s207 = smul.addr %s206, 8
          %s208 = scalar_lea.vmem [#allocation7], %s207
          %s209 = ssub.s32 1, %s26
          %s211 = ssub.s32 128, 128
          %212 = vsyncadd %s205, %s211
          %s213 = smul.addr %s209, 3
          %s214 = sadd.s32 %s27, %s213
          %s215 = smul.addr %s214, 128
          %s216 = scalar_lea.hbm %s2, %s215
          %s218 = sshll.u32 %s208, 4
          %s219 = int_to_ptr.vmem [resolvable:$true] %s218
          %221 = dma.hbm_to_vmem [thread:$0]  %s216, 128, %s219, %s205
        $region28: #{tpu_custom_call.1} parent=19 // pred_fallthru
          _
      $region20: #{tpu_custom_call.1} parent=5 // pred_fallthru
        _
      %p222 = scmp.le.s32.totalorder 1, %s19
      %p223 = scmp.lt.s32.totalorder %s19, 7
      %p224 = pnand %p222, %p223
      %p225 = pneg %p224
      // Predicated region
      $region29: #{tpu_custom_call.1} parent=5 // pred_check
        _
      $region30: #{tpu_custom_call.1} parent=5 // pred_check_branch
        %227 = sbr.rel (%p224) target = $region32
      $region31: #{tpu_custom_call.1} parent=5 // pred_region
        %s228 = ssub.s32 %s19, 1
        // Predicated region
        $region33: #{tpu_custom_call.1} parent=31 // pred_check
          %p229 = pneg %p59
        $region34: #{tpu_custom_call.1} parent=31 // pred_check_branch
          %231 = sbr.rel (%p229) target = $region36
        $region35: #{tpu_custom_call.1} parent=31 // pred_region
          %232 = dma.done [#allocation5], 16
        $region36: #{tpu_custom_call.1} parent=31 // pred_fallthru
          _
        %s233 = sand.u32 %s74, 1
        %s234 = scalar_lea.sflag [#allocation3], %s233
        %s235 = sand.u32 %s74, 1
        %s236 = smul.addr %s235, 8
        %s237 = scalar_lea.vmem [#allocation6], %s236
        // Predicated region
        $region37: #{tpu_custom_call.1} parent=31 // pred_check
          %p238 = pneg %p87
        $region38: #{tpu_custom_call.1} parent=31 // pred_check_branch
          %240 = sbr.rel (%p238) target = $region40
        $region39: #{tpu_custom_call.1} parent=31 // pred_region
          %241 = dma.done %s234, 128
        $region40: #{tpu_custom_call.1} parent=31 // pred_fallthru
          _
        %s242 = sand.u32 %s104, 1
        %s243 = scalar_lea.sflag [#allocation8], %s242
        %s244 = sand.u32 %s104, 1
        %s245 = smul.addr %s244, 8
        %s246 = scalar_lea.vmem [#allocation7], %s245
        // Predicated region
        $region41: #{tpu_custom_call.1} parent=31 // pred_check
          %p247 = pneg %p117
        $region42: #{tpu_custom_call.1} parent=31 // pred_check_branch
          %249 = sbr.rel (%p247) target = $region44
        $region43: #{tpu_custom_call.1} parent=31 // pred_region
          %250 = dma.done %s243, 128
        $region44: #{tpu_custom_call.1} parent=31 // pred_fallthru
          _
        %251 = sfence
        %p252 = pneg %p59
        %p253 = pneg %p56
        %s254 = sand.u32 %s74, 1
        %s255 = scalar_lea.sflag [#allocation3], %s254
        %s256 = sand.u32 %s74, 1
        %s257 = smul.addr %s256, 8
        %s258 = scalar_lea.vmem [#allocation6], %s257
        %p259 = pneg %p87
        %p260 = pneg %p84
        %s261 = sand.u32 %s104, 1
        %s262 = scalar_lea.sflag [#allocation8], %s261
        %s263 = sand.u32 %s104, 1
        %s264 = smul.addr %s263, 8
        %s265 = scalar_lea.vmem [#allocation7], %s264
        %p266 = pneg %p117
        %p267 = pneg %p114
        %p268 = pneg %p153
        %p269 = pneg %p150
        %s270 = sand.u32 %s140, 1
        %s271 = scalar_lea.sflag [#allocation4], %s270
        %s272 = sand.u32 %s140, 1
        %s273 = smul.addr %s272, 8
        %s274 = scalar_lea.vmem [#allocation9], %s273
        %s275 = ssub.s32 1, %s29
        %s276 = smul.u32 %s29, 2
        %s277 = ssub.s32 1, %s276
        %s278 = smul.u32 %s31, %s277
        %s279 = sadd.s32 %s29, %s278
        %s280 = sld [smem:[#allocation2 + %s31]]
        %s281 = ssub.s32 1, %s31
        %s282 = sld [smem:[#allocation2 + %s281]]
        %v283 = vld [vmem:[%s237] sm:$0xff]
        %v284 = vstv %s280
        %v285 = vmul.f32 %v284, %v283
        %v286 = vld [vmem:[%s246] sm:$0xff]
        %v287 = vstv %s282
        %v288 = vmul.f32 %v287, %v286
        %v289 = vadd.f32 %v285, %v288
        %290 = vst [vmem:[%s274] sm:$0xff] %v289
        %s291 = sand.u32 %s140, 1
        %s292 = scalar_lea.sflag [#allocation4], %s291
        %s293 = sand.u32 %s140, 1
        %s294 = smul.addr %s293, 8
        %s295 = scalar_lea.vmem [#allocation9], %s294
        // Predicated region
        $region45: #{tpu_custom_call.1} parent=31 // pred_check
          %p296 = pneg %p150
        $region46: #{tpu_custom_call.1} parent=31 // pred_check_branch
          %298 = sbr.rel (%p296) target = $region48
        $region47: #{tpu_custom_call.1} parent=31 // pred_region
          %s299 = smul.u32 %s29, 2
          %s300 = ssub.s32 1, %s299
          %s301 = smul.u32 %s31, %s300
          %s302 = sadd.s32 %s29, %s301
          %s304 = ssub.s32 128, 128
          %305 = vsyncadd %s292, %s304
          %s306 = smul.addr %s302, 3
          %s307 = sadd.s32 %s30, %s306
          %s308 = smul.addr %s307, 128
          %s309 = scalar_lea.hbm %s3, %s308
          %s311 = sshll.u32 %s295, 4
          %s312 = int_to_ptr.vmem [resolvable:$true] %s311
          %314 = dma.vmem_to_hbm [thread:$0]  %s312, 128, %s309, %s292
        $region48: #{tpu_custom_call.1} parent=31 // pred_fallthru
          _
      $region32: #{tpu_custom_call.1} parent=5 // pred_fallthru
        _
      %p315 = scmp.le.s32.totalorder 2, %s19
      // Predicated region
      $region49: #{tpu_custom_call.1} parent=5 // pred_check
        %p316 = pneg %p315
      $region50: #{tpu_custom_call.1} parent=5 // pred_check_branch
        %318 = sbr.rel (%p316) target = $region52
      $region51: #{tpu_custom_call.1} parent=5 // pred_region
        %s319 = ssub.s32 %s19, 2
        // Predicated region
        $region53: #{tpu_custom_call.1} parent=51 // pred_check
          %p320 = pneg %p156
        $region54: #{tpu_custom_call.1} parent=51 // pred_check_branch
          %322 = sbr.rel (%p320) target = $region56
        $region55: #{tpu_custom_call.1} parent=51 // pred_region
          %s323 = sand.u32 %s141, 1
          %s324 = scalar_lea.sflag [#allocation4], %s323
          %s325 = sand.u32 %s141, 1
          %s326 = smul.addr %s325, 8
          %s327 = scalar_lea.vmem [#allocation9], %s326
          %328 = dma.done %s324, 128
        $region56: #{tpu_custom_call.1} parent=51 // pred_fallthru
          _
      $region52: #{tpu_custom_call.1} parent=5 // pred_fallthru
        _
    $region6: #{tpu_custom_call.1} parent=1 // loop_footer
      %s23 = sadd.s32 1, %s19
    $region7: #{tpu_custom_call.1} parent=1 // loop_footer_branch
      %18 = sbr.rel target = $region3
    $region8: #{tpu_custom_call.1} parent=1 // loop_exit
      _
    %329 = vsyncpa [#allocation3], 1
    %s330 = scalar_lea.sflag [#allocation3], 1
    %331 = vsyncpa %s330, 1
    %332 = vsyncpa [#allocation8], 1
    %s333 = scalar_lea.sflag [#allocation8], 1
    %334 = vsyncpa %s333, 1
    %335 = vsyncpa [#allocation4], 1
    %s336 = scalar_lea.sflag [#allocation4], 1
    %337 = vsyncpa %s336, 1
    %338 = vsyncpa [#allocation5], 1
    %s339 = scalar_lea.sflag [#allocation5], 1
    %340 = vsyncpa %s339, 1

</llo_original>
